<compile_context>
chip_gen: v5e
topology: v5e:2x2
jax: 0.10.0
libtpu: 0.0.40
codegen_flags: <defaults>
</compile_context>

<pallas_src>
import jax
import jax.numpy as jnp
from jax.experimental import pallas as pl
from jax.experimental.pallas import tpu as pltpu

# layer dims: in -> out
LAYER_DIMS = [(28, 32), (32, 64), (64, 128), (128, 256), (256, 512), (512, 64), (64, 1)]
PAD_IN = 32  # first-layer contraction dim padded 28 -> 32


def _cdiv(a, b):
    return -(-a // b)


def _round_up(a, m):
    return _cdiv(a, m) * m


def mlp_kernel(x_ref,
               w1, b1, w2, b2, w3, b3, w4, b4, w5, b5, w6, b6, w7, b7,
               o_ref):
    def linear_relu(h, w_ref, b_ref):
        # bf16 MXU inputs, f32 accumulate; bias add + ReLU on the f32 VPU path,
        # then the activation is stored back as bf16 (halves inter-layer
        # vld/vst bytes and live activation VMEM).
        z = jnp.dot(h, w_ref[...], preferred_element_type=jnp.float32) + b_ref[...]
        return jnp.maximum(z, 0.0).astype(jnp.bfloat16)

    h = x_ref[...]                    # bf16 (rows, 32), features already zero-padded
    # fc1 .. fc6 : Linear -> ReLU  (dropout layers are identity at inference)
    # TODO(synk): training-mode dropout (pltpu.prng_random_bits mask) not implemented; eval semantics only.
    h = linear_relu(h, w1, b1)        # (rows, 32)
    h = linear_relu(h, w2, b2)        # (rows, 64)
    h = linear_relu(h, w3, b3)        # (rows, 128)
    h = linear_relu(h, w4, b4)        # (rows, 256)
    h = linear_relu(h, w5, b5)        # (rows, 512)
    h = linear_relu(h, w6, b6)        # (rows, 64)

    # fc7 (64 -> 1) off the MXU: VPU multiply against the (1, 64) weight row +
    # lane (XLU) reduce, accumulating in f32.
    z = jnp.sum(h.astype(jnp.float32) * w7[...], axis=-1, keepdims=True) + b7[...]

    # sigmoid: exp + approx reciprocal both land on the otherwise-idle EUP.
    o_ref[...] = pl.reciprocal(1.0 + jnp.exp(-z), approx=True).astype(o_ref.dtype)


def init_params(key):
    """Deterministic init mimicking PyTorch's default Linear init (U[-k, k], k=1/sqrt(fan_in)).
    Weights returned as (in, out) (already transposed for h @ W), biases as (1, out), all f32."""
    params = []
    for (fan_in, fan_out) in LAYER_DIMS:
        key, kw, kb = jax.random.split(key, 3)
        bound = 1.0 / (fan_in ** 0.5)
        w = jax.random.uniform(kw, (fan_in, fan_out), jnp.float32, -bound, bound)
        b = jax.random.uniform(kb, (1, fan_out), jnp.float32, -bound, bound)
        params.append((w, b))
    return params


def _prepare_params(params):
    """Pad w1's contraction dim 28->32; fc1-fc6 weights cast to bf16 (MXU path),
    fc7 passed as an f32 (1, 64) row for the VPU/XLU path; biases stay f32."""
    flat = []
    last = len(params) - 1
    for i, (w, b) in enumerate(params):
        if i == 0:
            w = jnp.pad(w, ((0, PAD_IN - w.shape[0]), (0, 0)))
        if i == last:
            flat.extend([w.astype(jnp.float32).T, b.astype(jnp.float32)])  # (1,64), (1,1)
        else:
            flat.extend([w.astype(jnp.bfloat16), b.astype(jnp.float32)])
    return flat


def _prepare_x(x):
    """Zero-pad features 28->32 and cast to bf16 (halves input DMA)."""
    x = jnp.pad(x, ((0, 0), (0, PAD_IN - x.shape[1])))
    return x.astype(jnp.bfloat16)


def _batch_dim_semantics():
    """CORE_PARALLEL on dual-TensorCore chips (v7x) so the batch grid is split
    across both cores; PARALLEL elsewhere."""
    try:
        kind = jax.devices()[0].device_kind.lower()
    except Exception:
        kind = ""
    if "v7" in kind or "7x" in kind:
        return (getattr(pltpu, "CORE_PARALLEL", pltpu.PARALLEL),)
    return (pltpu.PARALLEL,)


def model8_forward(x, params, *, tb=4096):
    B = x.shape[0]
    xp = _prepare_x(x)
    flat_params = _prepare_params(params)
    n_ops = 1 + len(flat_params)

    if B <= tb:
        # Small batch: single fused block, all operands VMEM-resident, no grid
        # (avoids per-step grid overhead). Working set bounded by tb rows.
        vmem_spec = pl.BlockSpec(memory_space=pltpu.MemorySpace.VMEM)
        return pl.pallas_call(
            mlp_kernel,
            out_shape=jax.ShapeDtypeStruct((B, 1), jnp.float32),
            in_specs=[vmem_spec] * n_ops,
            out_specs=vmem_spec,
            compiler_params=pltpu.CompilerParams(vmem_limit_bytes=32 * 1024 * 1024),
        )(xp, *flat_params)

    # Large batch: 1-D grid over row tiles; weights/biases pinned VMEM-resident
    # via constant index_maps. The batch is padded up to n_blocks * tb_eff
    # (never a monolithic fallback), with tb_eff shrunk so padding waste is
    # small; B > tb guarantees >= 2 blocks for dual-TC chips.
    n_blocks = _cdiv(B, tb)
    tb_eff = _round_up(min(tb, _cdiv(B, n_blocks)), 8)
    Bp = n_blocks * tb_eff
    xp = jnp.pad(xp, ((0, Bp - B), (0, 0)))

    x_spec = pl.BlockSpec((tb_eff, PAD_IN), lambda i: (i, 0))
    out_spec = pl.BlockSpec((tb_eff, 1), lambda i: (i, 0))
    param_specs = [pl.BlockSpec(p.shape, lambda i: (0, 0)) for p in flat_params]

    out = pl.pallas_call(
        mlp_kernel,
        out_shape=jax.ShapeDtypeStruct((Bp, 1), jnp.float32),
        grid=(n_blocks,),
        in_specs=[x_spec] + param_specs,
        out_specs=out_spec,
        compiler_params=pltpu.CompilerParams(
            dimension_semantics=_batch_dim_semantics(),
            vmem_limit_bytes=32 * 1024 * 1024,
        ),
    )(xp, *flat_params)
    return out[:B]


def model8_reference(x, params):
    """Pure-JAX reference mirroring the kernel's numerics (bf16 matmul inputs and
    bf16 inter-layer activations, f32 accumulation, f32 final layer)."""
    h = jnp.pad(x, ((0, 0), (0, PAD_IN - x.shape[1]))).astype(jnp.bfloat16)
    for i, (w, b) in enumerate(params[:-1]):
        if i == 0:
            w = jnp.pad(w, ((0, PAD_IN - w.shape[0]), (0, 0)))
        z = jnp.dot(h, w.astype(jnp.bfloat16), preferred_element_type=jnp.float32) + b
        h = jnp.maximum(z, 0.0).astype(jnp.bfloat16)
    w7, b7 = params[-1]
    z = jnp.dot(h.astype(jnp.float32), w7) + b7
    return jax.nn.sigmoid(z)


if __name__ == "__main__":
    key = jax.random.PRNGKey(0)
    k_params, k_x1, k_x2 = jax.random.split(key, 3)

    params = init_params(k_params)

    # Path 1: small batch -> single fused block (no grid).
    x_small = jax.random.normal(k_x1, (8, 28), dtype=jnp.float32)
    out_small = jax.block_until_ready(model8_forward(x_small, params))
    ref_small = model8_reference(x_small, params)
    assert out_small.shape == (8, 1), out_small.shape
    assert bool(jnp.all(jnp.isfinite(out_small)))
    assert jnp.allclose(out_small, ref_small, atol=5e-3, rtol=1e-2), \
        float(jnp.max(jnp.abs(out_small - ref_small)))

    # Path 2: batch not a multiple of the tile -> padded 1-D batch grid with
    # VMEM-resident weights (3 blocks of 96 rows here, last block partly padded).
    x_big = jax.random.normal(k_x2, (272, 28), dtype=jnp.float32)
    out_big = jax.block_until_ready(model8_forward(x_big, params, tb=128))
    ref_big = model8_reference(x_big, params)
    assert out_big.shape == (272, 1), out_big.shape
    assert bool(jnp.all(jnp.isfinite(out_big)))
    assert jnp.allclose(out_big, ref_big, atol=5e-3, rtol=1e-2), \
        float(jnp.max(jnp.abs(out_big - ref_big)))

    print("KERNEL_OK")
</pallas_src>

<mosaic_0001>
module attributes {stable_mosaic.version = 11 : i64} {
  func.func @mlp_kernel(%arg0: memref<8x32xbf16, #tpu.memory_space<vmem>>, %arg1: memref<32x32xbf16, #tpu.memory_space<vmem>>, %arg2: memref<1x32xf32, #tpu.memory_space<vmem>>, %arg3: memref<32x64xbf16, #tpu.memory_space<vmem>>, %arg4: memref<1x64xf32, #tpu.memory_space<vmem>>, %arg5: memref<64x128xbf16, #tpu.memory_space<vmem>>, %arg6: memref<1x128xf32, #tpu.memory_space<vmem>>, %arg7: memref<128x256xbf16, #tpu.memory_space<vmem>>, %arg8: memref<1x256xf32, #tpu.memory_space<vmem>>, %arg9: memref<256x512xbf16, #tpu.memory_space<vmem>>, %arg10: memref<1x512xf32, #tpu.memory_space<vmem>>, %arg11: memref<512x64xbf16, #tpu.memory_space<vmem>>, %arg12: memref<1x64xf32, #tpu.memory_space<vmem>>, %arg13: memref<1x64xf32, #tpu.memory_space<vmem>>, %arg14: memref<1x1xf32, #tpu.memory_space<vmem>>, %arg15: memref<8x1xf32, #tpu.memory_space<vmem>>) attributes {dimension_semantics = [], scalar_prefetch = 0 : i64, scratch_operands = 0 : i64, tpu.core_type = #tpu.core_type<tc>} {
    %c0 = arith.constant 0 : index
    %c0_0 = arith.constant 0 : index
    %0 = vector.load %arg0[%c0, %c0_0] : memref<8x32xbf16, #tpu.memory_space<vmem>>, vector<8x32xbf16>
    %c0_1 = arith.constant 0 : index
    %c0_2 = arith.constant 0 : index
    %1 = vector.load %arg1[%c0_1, %c0_2] : memref<32x32xbf16, #tpu.memory_space<vmem>>, vector<32x32xbf16>
    %cst = arith.constant dense<0.000000e+00> : vector<8x32xf32>
    %2 = tpu.matmul %0, %1, %cst {dimension_numbers = #tpu.dot_dimension_numbers<[1], [0], [0], [1], [0, 0, 1, 1], [], []>} : vector<8x32xbf16>, vector<32x32xbf16>, vector<8x32xf32> -> vector<8x32xf32>
    %c0_3 = arith.constant 0 : index
    %c0_4 = arith.constant 0 : index
    %3 = vector.load %arg2[%c0_3, %c0_4] : memref<1x32xf32, #tpu.memory_space<vmem>>, vector<1x32xf32>
    %4 = vector.broadcast %3 : vector<1x32xf32> to vector<8x32xf32>
    %5 = arith.addf %2, %4 : vector<8x32xf32>
    %cst_5 = arith.constant 0.000000e+00 : f32
    %6 = vector.broadcast %cst_5 : f32 to vector<8x32xf32>
    %7 = arith.maximumf %5, %6 : vector<8x32xf32>
    %8 = arith.truncf %7 : vector<8x32xf32> to vector<8x32xbf16>
    %c0_6 = arith.constant 0 : index
    %c0_7 = arith.constant 0 : index
    %9 = vector.load %arg3[%c0_6, %c0_7] : memref<32x64xbf16, #tpu.memory_space<vmem>>, vector<32x64xbf16>
    %cst_8 = arith.constant dense<0.000000e+00> : vector<8x64xf32>
    %10 = tpu.matmul %8, %9, %cst_8 {dimension_numbers = #tpu.dot_dimension_numbers<[1], [0], [0], [1], [0, 0, 1, 1], [], []>} : vector<8x32xbf16>, vector<32x64xbf16>, vector<8x64xf32> -> vector<8x64xf32>
    %c0_9 = arith.constant 0 : index
    %c0_10 = arith.constant 0 : index
    %11 = vector.load %arg4[%c0_9, %c0_10] : memref<1x64xf32, #tpu.memory_space<vmem>>, vector<1x64xf32>
    %12 = vector.broadcast %11 : vector<1x64xf32> to vector<8x64xf32>
    %13 = arith.addf %10, %12 : vector<8x64xf32>
    %cst_11 = arith.constant 0.000000e+00 : f32
    %14 = vector.broadcast %cst_11 : f32 to vector<8x64xf32>
    %15 = arith.maximumf %13, %14 : vector<8x64xf32>
    %16 = arith.truncf %15 : vector<8x64xf32> to vector<8x64xbf16>
    %c0_12 = arith.constant 0 : index
    %c0_13 = arith.constant 0 : index
    %17 = vector.load %arg5[%c0_12, %c0_13] : memref<64x128xbf16, #tpu.memory_space<vmem>>, vector<64x128xbf16>
    %cst_14 = arith.constant dense<0.000000e+00> : vector<8x128xf32>
    %18 = tpu.matmul %16, %17, %cst_14 {dimension_numbers = #tpu.dot_dimension_numbers<[1], [0], [0], [1], [0, 0, 1, 1], [], []>} : vector<8x64xbf16>, vector<64x128xbf16>, vector<8x128xf32> -> vector<8x128xf32>
    %c0_15 = arith.constant 0 : index
    %c0_16 = arith.constant 0 : index
    %19 = vector.load %arg6[%c0_15, %c0_16] : memref<1x128xf32, #tpu.memory_space<vmem>>, vector<1x128xf32>
    %20 = vector.broadcast %19 : vector<1x128xf32> to vector<8x128xf32>
    %21 = arith.addf %18, %20 : vector<8x128xf32>
    %cst_17 = arith.constant 0.000000e+00 : f32
    %22 = vector.broadcast %cst_17 : f32 to vector<8x128xf32>
    %23 = arith.maximumf %21, %22 : vector<8x128xf32>
    %24 = arith.truncf %23 : vector<8x128xf32> to vector<8x128xbf16>
    %c0_18 = arith.constant 0 : index
    %c0_19 = arith.constant 0 : index
    %25 = vector.load %arg7[%c0_18, %c0_19] : memref<128x256xbf16, #tpu.memory_space<vmem>>, vector<128x256xbf16>
    %cst_20 = arith.constant dense<0.000000e+00> : vector<8x256xf32>
    %26 = tpu.matmul %24, %25, %cst_20 {dimension_numbers = #tpu.dot_dimension_numbers<[1], [0], [0], [1], [0, 0, 1, 1], [], []>} : vector<8x128xbf16>, vector<128x256xbf16>, vector<8x256xf32> -> vector<8x256xf32>
    %c0_21 = arith.constant 0 : index
    %c0_22 = arith.constant 0 : index
    %27 = vector.load %arg8[%c0_21, %c0_22] : memref<1x256xf32, #tpu.memory_space<vmem>>, vector<1x256xf32>
    %28 = vector.broadcast %27 : vector<1x256xf32> to vector<8x256xf32>
    %29 = arith.addf %26, %28 : vector<8x256xf32>
    %cst_23 = arith.constant 0.000000e+00 : f32
    %30 = vector.broadcast %cst_23 : f32 to vector<8x256xf32>
    %31 = arith.maximumf %29, %30 : vector<8x256xf32>
    %32 = arith.truncf %31 : vector<8x256xf32> to vector<8x256xbf16>
    %c0_24 = arith.constant 0 : index
    %c0_25 = arith.constant 0 : index
    %33 = vector.load %arg9[%c0_24, %c0_25] : memref<256x512xbf16, #tpu.memory_space<vmem>>, vector<256x512xbf16>
    %cst_26 = arith.constant dense<0.000000e+00> : vector<8x512xf32>
    %34 = tpu.matmul %32, %33, %cst_26 {dimension_numbers = #tpu.dot_dimension_numbers<[1], [0], [0], [1], [0, 0, 1, 1], [], []>} : vector<8x256xbf16>, vector<256x512xbf16>, vector<8x512xf32> -> vector<8x512xf32>
    %c0_27 = arith.constant 0 : index
    %c0_28 = arith.constant 0 : index
    %35 = vector.load %arg10[%c0_27, %c0_28] : memref<1x512xf32, #tpu.memory_space<vmem>>, vector<1x512xf32>
    %36 = vector.broadcast %35 : vector<1x512xf32> to vector<8x512xf32>
    %37 = arith.addf %34, %36 : vector<8x512xf32>
    %cst_29 = arith.constant 0.000000e+00 : f32
    %38 = vector.broadcast %cst_29 : f32 to vector<8x512xf32>
    %39 = arith.maximumf %37, %38 : vector<8x512xf32>
    %40 = arith.truncf %39 : vector<8x512xf32> to vector<8x512xbf16>
    %c0_30 = arith.constant 0 : index
    %c0_31 = arith.constant 0 : index
    %41 = vector.load %arg11[%c0_30, %c0_31] : memref<512x64xbf16, #tpu.memory_space<vmem>>, vector<512x64xbf16>
    %cst_32 = arith.constant dense<0.000000e+00> : vector<8x64xf32>
    %42 = tpu.matmul %40, %41, %cst_32 {dimension_numbers = #tpu.dot_dimension_numbers<[1], [0], [0], [1], [0, 0, 1, 1], [], []>} : vector<8x512xbf16>, vector<512x64xbf16>, vector<8x64xf32> -> vector<8x64xf32>
    %c0_33 = arith.constant 0 : index
    %c0_34 = arith.constant 0 : index
    %43 = vector.load %arg12[%c0_33, %c0_34] : memref<1x64xf32, #tpu.memory_space<vmem>>, vector<1x64xf32>
    %44 = vector.broadcast %43 : vector<1x64xf32> to vector<8x64xf32>
    %45 = arith.addf %42, %44 : vector<8x64xf32>
    %cst_35 = arith.constant 0.000000e+00 : f32
    %46 = vector.broadcast %cst_35 : f32 to vector<8x64xf32>
    %47 = arith.maximumf %45, %46 : vector<8x64xf32>
    %48 = arith.truncf %47 : vector<8x64xf32> to vector<8x64xbf16>
    %49 = arith.extf %48 : vector<8x64xbf16> to vector<8x64xf32>
    %c0_36 = arith.constant 0 : index
    %c0_37 = arith.constant 0 : index
    %50 = vector.load %arg13[%c0_36, %c0_37] : memref<1x64xf32, #tpu.memory_space<vmem>>, vector<1x64xf32>
    %51 = vector.broadcast %50 : vector<1x64xf32> to vector<8x64xf32>
    %52 = arith.mulf %49, %51 : vector<8x64xf32>
    %cst_38 = arith.constant dense<0.000000e+00> : vector<8xf32>
    %53 = vector.multi_reduction <add>, %52, %cst_38 [1] : vector<8x64xf32> to vector<8xf32>
    %54 = vector.shape_cast %53 : vector<8xf32> to vector<8x1xf32>
    %c0_39 = arith.constant 0 : index
    %c0_40 = arith.constant 0 : index
    %55 = vector.load %arg14[%c0_39, %c0_40] : memref<1x1xf32, #tpu.memory_space<vmem>>, vector<1x1xf32>
    %56 = vector.broadcast %55 : vector<1x1xf32> to vector<8x1xf32>
    %57 = arith.addf %54, %56 : vector<8x1xf32>
    %cst_41 = arith.constant 0.000000e+00 : f32
    %58 = vector.broadcast %cst_41 : f32 to vector<8x1xf32>
    %59 = arith.subf %58, %57 : vector<8x1xf32>
    %60 = math.exp %59 : vector<8x1xf32>
    %cst_42 = arith.constant 1.000000e+00 : f32
    %61 = vector.broadcast %cst_42 : f32 to vector<8x1xf32>
    %62 = arith.addf %61, %60 : vector<8x1xf32>
    %63 = tpu.reciprocal %62 {approx = true} : vector<8x1xf32> -> vector<8x1xf32>
    %c0_43 = arith.constant 0 : index
    %c0_44 = arith.constant 0 : index
    %64 = vector.load %arg15[%c0_43, %c0_44] : memref<8x1xf32, #tpu.memory_space<vmem>>, vector<8x1xf32>
    tpu.vector_store %arg15[%c0_43, %c0_44], %63 {strides = array<i32>} : memref<8x1xf32, #tpu.memory_space<vmem>>, vector<8x1xf32>,
    return
  }
}

</mosaic_0001>

<llo_original>
// kernel: tpu_custom_call.1
$region0: #{tpu_custom_call.1}
  #allocation0 [shape = 'u32[]', space=smem, size = 0x4, offset = 0x4, fixed_abs, tag = 'smem constant byte address 0x4 - core index']
  #allocation1 [shape = 'u32[72,128]{1,0:T(1,128)}', space=vmem, size = 0x9000, scoped, tag = 'internal scratch']
  #allocation2 [shape = 'f32[1,1]{1,0:T(1,128)S(1)}', space=vmem, size = 0x200, scoped, tag = 'scoped memory for tpu_custom_call.1']
  %s0 = inlined_call_operand.vmem [shape: bf16[8,32], index: 0, kind: input, shape index: {}]
  %s1 = inlined_call_operand.vmem [shape: bf16[32,32], index: 1, kind: input, shape index: {}]
  %s2 = inlined_call_operand.vmem [shape: f32[1,32], index: 2, kind: input, shape index: {}]
  %s3 = inlined_call_operand.vmem [shape: bf16[32,64], index: 3, kind: input, shape index: {}]
  %s4 = inlined_call_operand.vmem [shape: f32[1,64], index: 4, kind: input, shape index: {}]
  %s5 = inlined_call_operand.vmem [shape: bf16[64,128], index: 5, kind: input, shape index: {}]
  %s6 = inlined_call_operand.vmem [shape: f32[1,128], index: 6, kind: input, shape index: {}]
  %s7 = inlined_call_operand.vmem [shape: bf16[128,256], index: 7, kind: input, shape index: {}]
  %s8 = inlined_call_operand.vmem [shape: f32[1,256], index: 8, kind: input, shape index: {}]
  %s9 = inlined_call_operand.hbm [shape: bf16[256,512], index: 9, kind: input, shape index: {}]
  %s10 = inlined_call_operand.vmem [shape: f32[1,512], index: 10, kind: input, shape index: {}]
  %s11 = inlined_call_operand.vmem [shape: bf16[512,64], index: 11, kind: input, shape index: {}]
  %s12 = inlined_call_operand.vmem [shape: f32[1,64], index: 12, kind: input, shape index: {}]
  %s13 = inlined_call_operand.vmem [shape: f32[1,64], index: 13, kind: input, shape index: {}]
  %s14 = inlined_call_operand.<no memory space> [shape: f32[1,1], index: 14, kind: input, shape index: {}]
  %s15 = inlined_call_operand.vmem [shape: f32[8,1], index: 15, kind: output, shape index: {}]
  %s16 = sld [smem:[#allocation0]]
  $region74: #{tpu_custom_call.1} parent=0
    _
  %s18 = ssub.s32 1, %s16
  %s19 = scalar_select 0, %s18, %s16
  %v20 = vstv %s14
  %21 = vst [vmem:[#allocation2] sm:$0x1] %v20
  $region1: #{tpu_custom_call.1} parent=0
    #allocation3 [shape = 'u8[262144]{0}', space=vmem, size = 0x40000, scoped, tag = 'input window, operand 9, single buffered']
    #allocation4 [shape = 's32[1]{0}', space=sflag, size = 0x4, scoped, tag = 'scoped memory for tpu_custom_call.1']
    %22 = vsyncpa [#allocation4], 0
    // Predicated region
    $region2: #{tpu_custom_call.1} parent=1 // pred_check
      _
    $region3: #{tpu_custom_call.1} parent=1 // pred_check_branch
      %24 = sbr.rel (0) target = $region5
    $region4: #{tpu_custom_call.1} parent=1 // pred_region
      _
    $region5: #{tpu_custom_call.1} parent=1 // pred_fallthru
      _
    // Predicated region
    $region6: #{tpu_custom_call.1} parent=1 // pred_check
      _
    $region7: #{tpu_custom_call.1} parent=1 // pred_check_branch
      %26 = sbr.rel (0) target = $region9
    $region8: #{tpu_custom_call.1} parent=1 // pred_region
      _
    $region9: #{tpu_custom_call.1} parent=1 // pred_fallthru
      _
    // Predicated region
    $region10: #{tpu_custom_call.1} parent=1 // pred_check
      _
    $region11: #{tpu_custom_call.1} parent=1 // pred_check_branch
      %28 = sbr.rel (0) target = $region13
    $region12: #{tpu_custom_call.1} parent=1 // pred_region
      _
    $region13: #{tpu_custom_call.1} parent=1 // pred_fallthru
      _
    // Predicated region
    $region14: #{tpu_custom_call.1} parent=1 // pred_check
      _
    $region15: #{tpu_custom_call.1} parent=1 // pred_check_branch
      %30 = sbr.rel (0) target = $region17
    $region16: #{tpu_custom_call.1} parent=1 // pred_region
      _
    $region17: #{tpu_custom_call.1} parent=1 // pred_fallthru
      _
    // Predicated region
    $region18: #{tpu_custom_call.1} parent=1 // pred_check
      _
    $region19: #{tpu_custom_call.1} parent=1 // pred_check_branch
      %32 = sbr.rel (0) target = $region21
    $region20: #{tpu_custom_call.1} parent=1 // pred_region
      _
    $region21: #{tpu_custom_call.1} parent=1 // pred_fallthru
      _
    // Predicated region
    $region22: #{tpu_custom_call.1} parent=1 // pred_check
      _
    $region23: #{tpu_custom_call.1} parent=1 // pred_check_branch
      %34 = sbr.rel (0) target = $region25
    $region24: #{tpu_custom_call.1} parent=1 // pred_region
      _
    $region25: #{tpu_custom_call.1} parent=1 // pred_fallthru
      _
    // Predicated region
    $region26: #{tpu_custom_call.1} parent=1 // pred_check
      _
    $region27: #{tpu_custom_call.1} parent=1 // pred_check_branch
      %36 = sbr.rel (0) target = $region29
    $region28: #{tpu_custom_call.1} parent=1 // pred_region
      _
    $region29: #{tpu_custom_call.1} parent=1 // pred_fallthru
      _
    // Predicated region
    $region30: #{tpu_custom_call.1} parent=1 // pred_check
      _
    $region31: #{tpu_custom_call.1} parent=1 // pred_check_branch
      %38 = sbr.rel (0) target = $region33
    $region32: #{tpu_custom_call.1} parent=1 // pred_region
      _
    $region33: #{tpu_custom_call.1} parent=1 // pred_fallthru
      _
    // Predicated region
    $region34: #{tpu_custom_call.1} parent=1 // pred_check
      _
    $region35: #{tpu_custom_call.1} parent=1 // pred_check_branch
      %40 = sbr.rel (0) target = $region37
    $region36: #{tpu_custom_call.1} parent=1 // pred_region
      _
    $region37: #{tpu_custom_call.1} parent=1 // pred_fallthru
      _
    // Predicated region
    $region38: #{tpu_custom_call.1} parent=1 // pred_check
      _
    $region39: #{tpu_custom_call.1} parent=1 // pred_check_branch
      %42 = sbr.rel (0) target = $region41
    $region40: #{tpu_custom_call.1} parent=1 // pred_region
      %44 = vsyncadd [#allocation4], 0
      %s45 = sshll.u32 %s9, 4
      %s46 = int_to_ptr.hbm [resolvable:$true] %s45
      %s47 = sshll.u32 [#allocation3], 4
      %s48 = int_to_ptr.vmem [resolvable:$true] %s47
      %53 = dma.hbm_to_vmem [thread:$0]  %s46, 8192, %s48, [#allocation4], 256, 256, 16
    $region41: #{tpu_custom_call.1} parent=1 // pred_fallthru
      _
    // Predicated region
    $region42: #{tpu_custom_call.1} parent=1 // pred_check
      _
    $region43: #{tpu_custom_call.1} parent=1 // pred_check_branch
      %55 = sbr.rel (0) target = $region45
    $region44: #{tpu_custom_call.1} parent=1 // pred_region
      _
    $region45: #{tpu_custom_call.1} parent=1 // pred_fallthru
      _
    // Predicated region
    $region46: #{tpu_custom_call.1} parent=1 // pred_check
      _
    $region47: #{tpu_custom_call.1} parent=1 // pred_check_branch
      %57 = sbr.rel (0) target = $region49
    $region48: #{tpu_custom_call.1} parent=1 // pred_region
      _
    $region49: #{tpu_custom_call.1} parent=1 // pred_fallthru
      _
    // Predicated region
    $region50: #{tpu_custom_call.1} parent=1 // pred_check
      _
    $region51: #{tpu_custom_call.1} parent=1 // pred_check_branch
      %59 = sbr.rel (0) target = $region53
    $region52: #{tpu_custom_call.1} parent=1 // pred_region
      _
    $region53: #{tpu_custom_call.1} parent=1 // pred_fallthru
      _
    // Predicated region
    $region54: #{tpu_custom_call.1} parent=1 // pred_check
      _
    $region55: #{tpu_custom_call.1} parent=1 // pred_check_branch
      %61 = sbr.rel (0) target = $region57
    $region56: #{tpu_custom_call.1} parent=1 // pred_region
      _
    $region57: #{tpu_custom_call.1} parent=1 // pred_fallthru
      _
    // Predicated region
    $region58: #{tpu_custom_call.1} parent=1 // pred_check
      _
    $region59: #{tpu_custom_call.1} parent=1 // pred_check_branch
      %63 = sbr.rel (0) target = $region61
    $region60: #{tpu_custom_call.1} parent=1 // pred_region
      _
    $region61: #{tpu_custom_call.1} parent=1 // pred_fallthru
      _
    // Predicated region
    $region62: #{tpu_custom_call.1} parent=1 // pred_check
      _
    $region63: #{tpu_custom_call.1} parent=1 // pred_check_branch
      %65 = sbr.rel (0) target = $region65
    $region64: #{tpu_custom_call.1} parent=1 // pred_region
      %67 = dma.done [#allocation4], 8192
    $region65: #{tpu_custom_call.1} parent=1 // pred_fallthru
      _
    %v69 = vld [vmem:[%s0] sm:$0xf]
    %v70 = vld [vmem:[%s1] sm:$0xf]
    %v71 = vld [vmem:[%s1 + $0x4] sm:$0xf]
    %v72 = vld [vmem:[%s1 + $0x8] sm:$0xf]
    %v73 = vld [vmem:[%s1 + $0xc] sm:$0xf]
    %v74 = vld [vmem:[%s2] sm:$0x1]
    %v76 = vperm.slane %v74, 0
    %v82 = vunpack.c.l.b16 %v70
    %v83 = vunpack.c.l.b16 %v71
    %v84 = vunpack.c.l.b16 %v72
    %v85 = vunpack.c.l.b16 %v73
    %v86 = vpack.c.b16 %v83, %v82
    %v87 = vpack.c.b16 %v85, %v84
    %vm90 = vcmask 261120
    %v92 = vsel %vm90, %v69, 0
    %94 = vmatpush.bf16.msra.mxu0 0
    %95 = vmatpush.bf16.msra.mxu0 0
    %96 = vmatpush.bf16.msra.mxu0 0
    %97 = vmatpush.bf16.msra.mxu0 0
    %98 = vmatpush.bf16.msra.mxu0 0
    %99 = vmatpush.bf16.msra.mxu0 0
    %100 = vmatpush.bf16.msra.mxu0 %v87
    %101 = vmatpush.bf16.msra.mxu0 %v86
    %102 = vmatmul.bf16.gmra.mxu0 %v92
    %v103 = vpop.f32.mrf.mxu0
    %v104 = vadd.f32 %v76, %v103
    %v105 = vpop.f32.mrf.mxu0
    %106 = vdwg.mxu0
    %v107 = vmax.f32 %v104, 0.0
    %v108 = vpack.c.bf16 %v107, %v107
    %v109 = vld [vmem:[%s3] sm:$0xf]
    %v110 = vld [vmem:[%s3 + $0x4] sm:$0xf]
    %v111 = vld [vmem:[%s3 + $0x8] sm:$0xf]
    %v112 = vld [vmem:[%s3 + $0xc] sm:$0xf]
    %v113 = vld [vmem:[%s4] sm:$0x1]
    %v115 = vperm.slane %v113, 0
    %v121 = vunpack.c.l.b16 %v109
    %v122 = vunpack.c.l.b16 %v110
    %v123 = vunpack.c.l.b16 %v111
    %v124 = vunpack.c.l.b16 %v112
    %v125 = vpack.c.b16 %v122, %v121
    %v126 = vpack.c.b16 %v124, %v123
    %v130 = vsel %vm90, %v108, 0
    %132 = vmatpush.bf16.msra.mxu0 0
    %133 = vmatpush.bf16.msra.mxu0 0
    %134 = vmatpush.bf16.msra.mxu0 0
    %135 = vmatpush.bf16.msra.mxu0 0
    %136 = vmatpush.bf16.msra.mxu0 0
    %137 = vmatpush.bf16.msra.mxu0 0
    %138 = vmatpush.bf16.msra.mxu0 %v126
    %139 = vmatpush.bf16.msra.mxu0 %v125
    %140 = vmatmul.bf16.gmra.mxu0 %v130
    %v141 = vpop.f32.mrf.mxu0
    %v142 = vadd.f32 %v115, %v141
    %v143 = vpop.f32.mrf.mxu0
    %144 = vdwg.mxu0
    %v145 = vmax.f32 %v142, 0.0
    %v146 = vpack.c.bf16 %v145, %v145
    %v147 = vld [vmem:[%s5] sm:$0xf]
    %v148 = vld [vmem:[%s5 + $0x4] sm:$0xf]
    %v149 = vld [vmem:[%s5 + $0x8] sm:$0xf]
    %v150 = vld [vmem:[%s5 + $0xc] sm:$0xf]
    %v151 = vld [vmem:[%s5 + $0x10] sm:$0xf]
    %v152 = vld [vmem:[%s5 + $0x14] sm:$0xf]
    %v153 = vld [vmem:[%s5 + $0x18] sm:$0xf]
    %v154 = vld [vmem:[%s5 + $0x1c] sm:$0xf]
    %v155 = vld [vmem:[%s6] sm:$0x1]
    %v157 = vperm.slane %v155, 0
    %v167 = vunpack.c.l.b16 %v147
    %v168 = vunpack.c.l.b16 %v148
    %v169 = vunpack.c.l.b16 %v149
    %v170 = vunpack.c.l.b16 %v150
    %v171 = vunpack.c.l.b16 %v151
    %v172 = vunpack.c.l.b16 %v152
    %v173 = vunpack.c.l.b16 %v153
    %v174 = vunpack.c.l.b16 %v154
    %v175 = vpack.c.b16 %v168, %v167
    %v176 = vpack.c.b16 %v170, %v169
    %v177 = vpack.c.b16 %v172, %v171
    %v178 = vpack.c.b16 %v174, %v173
    %vm183 = vcmask 523264
    %v185 = vsel %vm183, %v146, 0
    %187 = vmatpush.bf16.msra.mxu0 0
    %188 = vmatpush.bf16.msra.mxu0 0
    %189 = vmatpush.bf16.msra.mxu0 0
    %190 = vmatpush.bf16.msra.mxu0 0
    %191 = vmatpush.bf16.msra.mxu0 %v178
    %192 = vmatpush.bf16.msra.mxu0 %v177
    %193 = vmatpush.bf16.msra.mxu0 %v176
    %194 = vmatpush.bf16.msra.mxu0 %v175
    %195 = vmatmul.bf16.gmra.mxu0 %v185
    %v196 = vpop.f32.mrf.mxu0
    %v197 = vadd.f32 %v157, %v196
    %v198 = vpop.f32.mrf.mxu0
    %199 = vdwg.mxu0
    %v200 = vmax.f32 %v197, 0.0
    %v201 = vpack.c.bf16 %v200, %v200
    %v202 = vld [vmem:[%s7] sm:$0xff]
    %v203 = vld [vmem:[%s7 + $0x8] sm:$0xff]
    %v204 = vld [vmem:[%s7 + $0x10] sm:$0xff]
    %v205 = vld [vmem:[%s7 + $0x18] sm:$0xff]
    %v206 = vld [vmem:[%s7 + $0x20] sm:$0xff]
    %v207 = vld [vmem:[%s7 + $0x28] sm:$0xff]
    %v208 = vld [vmem:[%s7 + $0x30] sm:$0xff]
    %v209 = vld [vmem:[%s7 + $0x38] sm:$0xff]
    %v210 = vld [vmem:[%s7 + $0x40] sm:$0xff]
    %v211 = vld [vmem:[%s7 + $0x48] sm:$0xff]
    %v212 = vld [vmem:[%s7 + $0x50] sm:$0xff]
    %v213 = vld [vmem:[%s7 + $0x58] sm:$0xff]
    %v214 = vld [vmem:[%s7 + $0x60] sm:$0xff]
    %v215 = vld [vmem:[%s7 + $0x68] sm:$0xff]
    %v216 = vld [vmem:[%s7 + $0x70] sm:$0xff]
    %v217 = vld [vmem:[%s7 + $0x78] sm:$0xff]
    %v218 = vld [vmem:[%s8] sm:$0x3]
    %v220 = vperm.slane %v218, 0
    %v221 = vperm.slane %v218, 1
    %v240 = vunpack.c.l.b16 %v202
    %v241 = vunpack.c.h.b16 %v202
    %v242 = vunpack.c.l.b16 %v203
    %v243 = vunpack.c.h.b16 %v203
    %v244 = vunpack.c.l.b16 %v204
    %v245 = vunpack.c.h.b16 %v204
    %v246 = vunpack.c.l.b16 %v205
    %v247 = vunpack.c.h.b16 %v205
    %v248 = vunpack.c.l.b16 %v206
    %v249 = vunpack.c.h.b16 %v206
    %v250 = vunpack.c.l.b16 %v207
    %v251 = vunpack.c.h.b16 %v207
    %v252 = vunpack.c.l.b16 %v208
    %v253 = vunpack.c.h.b16 %v208
    %v254 = vunpack.c.l.b16 %v209
    %v255 = vunpack.c.h.b16 %v209
    %v256 = vunpack.c.l.b16 %v210
    %v257 = vunpack.c.h.b16 %v210
    %v258 = vunpack.c.l.b16 %v211
    %v259 = vunpack.c.h.b16 %v211
    %v260 = vunpack.c.l.b16 %v212
    %v261 = vunpack.c.h.b16 %v212
    %v262 = vunpack.c.l.b16 %v213
    %v263 = vunpack.c.h.b16 %v213
    %v264 = vunpack.c.l.b16 %v214
    %v265 = vunpack.c.h.b16 %v214
    %v266 = vunpack.c.l.b16 %v215
    %v267 = vunpack.c.h.b16 %v215
    %v268 = vunpack.c.l.b16 %v216
    %v269 = vunpack.c.h.b16 %v216
    %v270 = vunpack.c.l.b16 %v217
    %v271 = vunpack.c.h.b16 %v217
    %v272 = vpack.c.b16 %v242, %v240
    %v273 = vpack.c.b16 %v243, %v241
    %v274 = vpack.c.b16 %v246, %v244
    %v275 = vpack.c.b16 %v247, %v245
    %v276 = vpack.c.b16 %v250, %v248
    %v277 = vpack.c.b16 %v251, %v249
    %v278 = vpack.c.b16 %v254, %v252
    %v279 = vpack.c.b16 %v255, %v253
    %v280 = vpack.c.b16 %v258, %v256
    %v281 = vpack.c.b16 %v259, %v257
    %v282 = vpack.c.b16 %v262, %v260
    %v283 = vpack.c.b16 %v263, %v261
    %v284 = vpack.c.b16 %v266, %v264
    %v285 = vpack.c.b16 %v267, %v265
    %v286 = vpack.c.b16 %v270, %v268
    %v287 = vpack.c.b16 %v271, %v269
    %304 = vmatpush.bf16.msra.mxu0 %v286
    %305 = vmatpush.bf16.msra.mxu0 %v284
    %306 = vmatpush.bf16.msra.mxu0 %v282
    %307 = vmatpush.bf16.msra.mxu0 %v280
    %308 = vmatpush.bf16.msra.mxu0 %v278
    %309 = vmatpush.bf16.msra.mxu0 %v276
    %310 = vmatpush.bf16.msra.mxu0 %v274
    %311 = vmatpush.bf16.msra.mxu0 %v272
    %312 = vmatmul.bf16.gmra.mxu0 %v201
    %v313 = vpop.f32.mrf.mxu0
    %v314 = vadd.f32 %v220, %v313
    %v315 = vpop.f32.mrf.mxu0
    %316 = vdwg.mxu0
    %317 = vmatpush.bf16.msra.mxu0 %v287
    %318 = vmatpush.bf16.msra.mxu0 %v285
    %319 = vmatpush.bf16.msra.mxu0 %v283
    %320 = vmatpush.bf16.msra.mxu0 %v281
    %321 = vmatpush.bf16.msra.mxu0 %v279
    %322 = vmatpush.bf16.msra.mxu0 %v277
    %323 = vmatpush.bf16.msra.mxu0 %v275
    %324 = vmatpush.bf16.msra.mxu0 %v273
    %325 = vmatmul.bf16.gmra.mxu0 %v201
    %v326 = vpop.f32.mrf.mxu0
    %v327 = vadd.f32 %v221, %v326
    %v328 = vpop.f32.mrf.mxu0
    %329 = vdwg.mxu0
    %v330 = vmax.f32 %v314, 0.0
    %v331 = vmax.f32 %v327, 0.0
    %v332 = vpack.c.bf16 %v330, %v330
    %v333 = vpack.c.bf16 %v331, %v331
    %v334 = vld [vmem:[#allocation3] sm:$0xff]
    %v335 = vld [vmem:[#allocation3 + $0x8] sm:$0xff]
    %v336 = vld [vmem:[#allocation3 + $0x10] sm:$0xff]
    %v337 = vld [vmem:[#allocation3 + $0x18] sm:$0xff]
    %v338 = vld [vmem:[#allocation3 + $0x20] sm:$0xff]
    %v339 = vld [vmem:[#allocation3 + $0x28] sm:$0xff]
    %v340 = vld [vmem:[#allocation3 + $0x30] sm:$0xff]
    %v341 = vld [vmem:[#allocation3 + $0x38] sm:$0xff]
    %v342 = vld [vmem:[#allocation3 + $0x40] sm:$0xff]
    %v343 = vld [vmem:[#allocation3 + $0x48] sm:$0xff]
    %v344 = vld [vmem:[#allocation3 + $0x50] sm:$0xff]
    %v345 = vld [vmem:[#allocation3 + $0x58] sm:$0xff]
    %v346 = vld [vmem:[#allocation3 + $0x60] sm:$0xff]
    %v347 = vld [vmem:[#allocation3 + $0x68] sm:$0xff]
    %v348 = vld [vmem:[#allocation3 + $0x70] sm:$0xff]
    %v349 = vld [vmem:[#allocation3 + $0x78] sm:$0xff]
    %v350 = vld [vmem:[#allocation3 + $0x80] sm:$0xff]
    %v351 = vld [vmem:[#allocation3 + $0x88] sm:$0xff]
    %v352 = vld [vmem:[#allocation3 + $0x90] sm:$0xff]
    %v353 = vld [vmem:[#allocation3 + $0x98] sm:$0xff]
    %v354 = vld [vmem:[#allocation3 + $0xa0] sm:$0xff]
    %v355 = vld [vmem:[#allocation3 + $0xa8] sm:$0xff]
    %v356 = vld [vmem:[#allocation3 + $0xb0] sm:$0xff]
    %v357 = vld [vmem:[#allocation3 + $0xb8] sm:$0xff]
    %v358 = vld [vmem:[#allocation3 + $0xc0] sm:$0xff]
    %v359 = vld [vmem:[#allocation3 + $0xc8] sm:$0xff]
    %v360 = vld [vmem:[#allocation3 + $0xd0] sm:$0xff]
    %v361 = vld [vmem:[#allocation3 + $0xd8] sm:$0xff]
    %v362 = vld [vmem:[#allocation3 + $0xe0] sm:$0xff]
    %v363 = vld [vmem:[#allocation3 + $0xe8] sm:$0xff]
    %v364 = vld [vmem:[#allocation3 + $0xf0] sm:$0xff]
    %v365 = vld [vmem:[#allocation3 + $0xf8] sm:$0xff]
    %v366 = vld [vmem:[#allocation3 + $0x100] sm:$0xff]
    %v367 = vld [vmem:[#allocation3 + $0x108] sm:$0xff]
    %v368 = vld [vmem:[#allocation3 + $0x110] sm:$0xff]
    %v369 = vld [vmem:[#allocation3 + $0x118] sm:$0xff]
    %v370 = vld [vmem:[#allocation3 + $0x120] sm:$0xff]
    %v371 = vld [vmem:[#allocation3 + $0x128] sm:$0xff]
    %v372 = vld [vmem:[#allocation3 + $0x130] sm:$0xff]
    %v373 = vld [vmem:[#allocation3 + $0x138] sm:$0xff]
    %v374 = vld [vmem:[#allocation3 + $0x140] sm:$0xff]
    %v375 = vld [vmem:[#allocation3 + $0x148] sm:$0xff]
    %v376 = vld [vmem:[#allocation3 + $0x150] sm:$0xff]
    %v377 = vld [vmem:[#allocation3 + $0x158] sm:$0xff]
    %v378 = vld [vmem:[#allocation3 + $0x160] sm:$0xff]
    %v379 = vld [vmem:[#allocation3 + $0x168] sm:$0xff]
    %v380 = vld [vmem:[#allocation3 + $0x170] sm:$0xff]
    %v381 = vld [vmem:[#allocation3 + $0x178] sm:$0xff]
    %v382 = vld [vmem:[#allocation3 + $0x180] sm:$0xff]
    %v383 = vld [vmem:[#allocation3 + $0x188] sm:$0xff]
    %v384 = vld [vmem:[#allocation3 + $0x190] sm:$0xff]
    %v385 = vld [vmem:[#allocation3 + $0x198] sm:$0xff]
    %v386 = vld [vmem:[#allocation3 + $0x1a0] sm:$0xff]
    %v387 = vld [vmem:[#allocation3 + $0x1a8] sm:$0xff]
    %v388 = vld [vmem:[#allocation3 + $0x1b0] sm:$0xff]
    %v389 = vld [vmem:[#allocation3 + $0x1b8] sm:$0xff]
    %v390 = vld [vmem:[#allocation3 + $0x1c0] sm:$0xff]
    %v391 = vld [vmem:[#allocation3 + $0x1c8] sm:$0xff]
    %v392 = vld [vmem:[#allocation3 + $0x1d0] sm:$0xff]
    %v393 = vld [vmem:[#allocation3 + $0x1d8] sm:$0xff]
    %v394 = vld [vmem:[#allocation3 + $0x1e0] sm:$0xff]
    %v395 = vld [vmem:[#allocation3 + $0x1e8] sm:$0xff]
    %v396 = vld [vmem:[#allocation3 + $0x1f0] sm:$0xff]
    %v397 = vld [vmem:[#allocation3 + $0x1f8] sm:$0xff]
    %v398 = vld [vmem:[%s10] sm:$0xf]
    %v400 = vperm.slane %v398, 0
    %v401 = vperm.slane %v398, 1
    %v402 = vperm.slane %v398, 2
    %v403 = vperm.slane %v398, 3
    %v472 = vunpack.c.l.b16 %v334
    %v473 = vunpack.c.h.b16 %v334
    %v474 = vunpack.c.l.b16 %v335
    %v475 = vunpack.c.h.b16 %v335
    %v476 = vunpack.c.l.b16 %v336
    %v477 = vunpack.c.h.b16 %v336
    %v478 = vunpack.c.l.b16 %v337
    %v479 = vunpack.c.h.b16 %v337
    %v480 = vunpack.c.l.b16 %v338
    %v481 = vunpack.c.h.b16 %v338
    %v482 = vunpack.c.l.b16 %v339
    %v483 = vunpack.c.h.b16 %v339
    %v484 = vunpack.c.l.b16 %v340
    %v485 = vunpack.c.h.b16 %v340
    %v486 = vunpack.c.l.b16 %v341
    %v487 = vunpack.c.h.b16 %v341
    %v488 = vunpack.c.l.b16 %v342
    %v489 = vunpack.c.h.b16 %v342
    %v490 = vunpack.c.l.b16 %v343
    %v491 = vunpack.c.h.b16 %v343
    %v492 = vunpack.c.l.b16 %v344
    %v493 = vunpack.c.h.b16 %v344
    %v494 = vunpack.c.l.b16 %v345
    %v495 = vunpack.c.h.b16 %v345
    %v496 = vunpack.c.l.b16 %v346
    %v497 = vunpack.c.h.b16 %v346
    %v498 = vunpack.c.l.b16 %v347
    %v499 = vunpack.c.h.b16 %v347
    %v500 = vunpack.c.l.b16 %v348
    %v501 = vunpack.c.h.b16 %v348
    %v502 = vunpack.c.l.b16 %v349
    %v503 = vunpack.c.h.b16 %v349
    %v504 = vunpack.c.l.b16 %v350
    %v505 = vunpack.c.h.b16 %v350
    %v506 = vunpack.c.l.b16 %v351
    %v507 = vunpack.c.h.b16 %v351
    %v508 = vunpack.c.l.b16 %v352
    %v509 = vunpack.c.h.b16 %v352
    %v510 = vunpack.c.l.b16 %v353
    %v511 = vunpack.c.h.b16 %v353
    %v512 = vunpack.c.l.b16 %v354
    %v513 = vunpack.c.h.b16 %v354
    %v514 = vunpack.c.l.b16 %v355
    %v515 = vunpack.c.h.b16 %v355
    %v516 = vunpack.c.l.b16 %v356
    %v517 = vunpack.c.h.b16 %v356
    %v518 = vunpack.c.l.b16 %v357
    %v519 = vunpack.c.h.b16 %v357
    %v520 = vunpack.c.l.b16 %v358
    %v521 = vunpack.c.h.b16 %v358
    %v522 = vunpack.c.l.b16 %v359
    %v523 = vunpack.c.h.b16 %v359
    %v524 = vunpack.c.l.b16 %v360
    %v525 = vunpack.c.h.b16 %v360
    %v526 = vunpack.c.l.b16 %v361
    %v527 = vunpack.c.h.b16 %v361
    %v528 = vunpack.c.l.b16 %v362
    %v529 = vunpack.c.h.b16 %v362
    %v530 = vunpack.c.l.b16 %v363
    %v531 = vunpack.c.h.b16 %v363
    %v532 = vunpack.c.l.b16 %v364
    %v533 = vunpack.c.h.b16 %v364
    %v534 = vunpack.c.l.b16 %v365
    %v535 = vunpack.c.h.b16 %v365
    %v536 = vunpack.c.l.b16 %v366
    %v537 = vunpack.c.h.b16 %v366
    %v538 = vunpack.c.l.b16 %v367
    %v539 = vunpack.c.h.b16 %v367
    %v540 = vunpack.c.l.b16 %v368
    %v541 = vunpack.c.h.b16 %v368
    %v542 = vunpack.c.l.b16 %v369
    %v543 = vunpack.c.h.b16 %v369
    %v544 = vunpack.c.l.b16 %v370
    %v545 = vunpack.c.h.b16 %v370
    %v546 = vunpack.c.l.b16 %v371
    %v547 = vunpack.c.h.b16 %v371
    %v548 = vunpack.c.l.b16 %v372
    %v549 = vunpack.c.h.b16 %v372
    %v550 = vunpack.c.l.b16 %v373
    %v551 = vunpack.c.h.b16 %v373
    %v552 = vunpack.c.l.b16 %v374
    %v553 = vunpack.c.h.b16 %v374
    %v554 = vunpack.c.l.b16 %v375
    %v555 = vunpack.c.h.b16 %v375
    %v556 = vunpack.c.l.b16 %v376
    %v557 = vunpack.c.h.b16 %v376
    %v558 = vunpack.c.l.b16 %v377
    %v559 = vunpack.c.h.b16 %v377
    %v560 = vunpack.c.l.b16 %v378
    %v561 = vunpack.c.h.b16 %v378
    %v562 = vunpack.c.l.b16 %v379
    %v563 = vunpack.c.h.b16 %v379
    %v564 = vunpack.c.l.b16 %v380
    %v565 = vunpack.c.h.b16 %v380
    %v566 = vunpack.c.l.b16 %v381
    %v567 = vunpack.c.h.b16 %v381
    %v568 = vunpack.c.l.b16 %v382
    %v569 = vunpack.c.h.b16 %v382
    %v570 = vunpack.c.l.b16 %v383
    %v571 = vunpack.c.h.b16 %v383
    %v572 = vunpack.c.l.b16 %v384
    %v573 = vunpack.c.h.b16 %v384
    %v574 = vunpack.c.l.b16 %v385
    %v575 = vunpack.c.h.b16 %v385
    %v576 = vunpack.c.l.b16 %v386
    %v577 = vunpack.c.h.b16 %v386
    %v578 = vunpack.c.l.b16 %v387
    %v579 = vunpack.c.h.b16 %v387
    %v580 = vunpack.c.l.b16 %v388
    %v581 = vunpack.c.h.b16 %v388
    %v582 = vunpack.c.l.b16 %v389
    %v583 = vunpack.c.h.b16 %v389
    %v584 = vunpack.c.l.b16 %v390
    %v585 = vunpack.c.h.b16 %v390
    %v586 = vunpack.c.l.b16 %v391
    %v587 = vunpack.c.h.b16 %v391
    %v588 = vunpack.c.l.b16 %v392
    %v589 = vunpack.c.h.b16 %v392
    %v590 = vunpack.c.l.b16 %v393
    %v591 = vunpack.c.h.b16 %v393
    %v592 = vunpack.c.l.b16 %v394
    %v593 = vunpack.c.h.b16 %v394
    %v594 = vunpack.c.l.b16 %v395
    %v595 = vunpack.c.h.b16 %v395
    %v596 = vunpack.c.l.b16 %v396
    %v597 = vunpack.c.h.b16 %v396
    %v598 = vunpack.c.l.b16 %v397
    %v599 = vunpack.c.h.b16 %v397
    %v600 = vpack.c.b16 %v476, %v472
    %v601 = vpack.c.b16 %v477, %v473
    %v602 = vpack.c.b16 %v478, %v474
    %v603 = vpack.c.b16 %v479, %v475
    %v604 = vpack.c.b16 %v484, %v480
    %v605 = vpack.c.b16 %v485, %v481
    %v606 = vpack.c.b16 %v486, %v482
    %v607 = vpack.c.b16 %v487, %v483
    %v608 = vpack.c.b16 %v492, %v488
    %v609 = vpack.c.b16 %v493, %v489
    %v610 = vpack.c.b16 %v494, %v490
    %v611 = vpack.c.b16 %v495, %v491
    %v612 = vpack.c.b16 %v500, %v496
    %v613 = vpack.c.b16 %v501, %v497
    %v614 = vpack.c.b16 %v502, %v498
    %v615 = vpack.c.b16 %v503, %v499
    %v616 = vpack.c.b16 %v508, %v504
    %v617 = vpack.c.b16 %v509, %v505
    %v618 = vpack.c.b16 %v510, %v506
    %v619 = vpack.c.b16 %v511, %v507
    %v620 = vpack.c.b16 %v516, %v512
    %v621 = vpack.c.b16 %v517, %v513
    %v622 = vpack.c.b16 %v518, %v514
    %v623 = vpack.c.b16 %v519, %v515
    %v624 = vpack.c.b16 %v524, %v520
    %v625 = vpack.c.b16 %v525, %v521
    %v626 = vpack.c.b16 %v526, %v522
    %v627 = vpack.c.b16 %v527, %v523
    %v628 = vpack.c.b16 %v532, %v528
    %v629 = vpack.c.b16 %v533, %v529
    %v630 = vpack.c.b16 %v534, %v530
    %v631 = vpack.c.b16 %v535, %v531
    %v632 = vpack.c.b16 %v540, %v536
    %v633 = vpack.c.b16 %v541, %v537
    %v634 = vpack.c.b16 %v542, %v538
    %v635 = vpack.c.b16 %v543, %v539
    %v636 = vpack.c.b16 %v548, %v544
    %v637 = vpack.c.b16 %v549, %v545
    %v638 = vpack.c.b16 %v550, %v546
    %v639 = vpack.c.b16 %v551, %v547
    %v640 = vpack.c.b16 %v556, %v552
    %v641 = vpack.c.b16 %v557, %v553
    %v642 = vpack.c.b16 %v558, %v554
    %v643 = vpack.c.b16 %v559, %v555
    %v644 = vpack.c.b16 %v564, %v560
    %v645 = vpack.c.b16 %v565, %v561
    %v646 = vpack.c.b16 %v566, %v562
    %v647 = vpack.c.b16 %v567, %v563
    %v648 = vpack.c.b16 %v572, %v568
    %v649 = vpack.c.b16 %v573, %v569
    %v650 = vpack.c.b16 %v574, %v570
    %v651 = vpack.c.b16 %v575, %v571
    %v652 = vpack.c.b16 %v580, %v576
    %v653 = vpack.c.b16 %v581, %v577
    %v654 = vpack.c.b16 %v582, %v578
    %v655 = vpack.c.b16 %v583, %v579
    %v656 = vpack.c.b16 %v588, %v584
    %v657 = vpack.c.b16 %v589, %v585
    %v658 = vpack.c.b16 %v590, %v586
    %v659 = vpack.c.b16 %v591, %v587
    %v660 = vpack.c.b16 %v596, %v592
    %v661 = vpack.c.b16 %v597, %v593
    %v662 = vpack.c.b16 %v598, %v594
    %v663 = vpack.c.b16 %v599, %v595
    %728 = vmatpush.bf16.msra.mxu0 %v628
    %729 = vmatpush.bf16.msra.mxu0 %v624
    %730 = vmatpush.bf16.msra.mxu0 %v620
    %731 = vmatpush.bf16.msra.mxu0 %v616
    %732 = vmatpush.bf16.msra.mxu0 %v612
    %733 = vmatpush.bf16.msra.mxu0 %v608
    %734 = vmatpush.bf16.msra.mxu0 %v604
    %735 = vmatpush.bf16.msra.mxu0 %v600
    %736 = vmatmul.bf16.gmra.mxu0 %v332
    %v737 = vpop.f32.mrf.mxu0
    %v738 = vadd.f32 %v400, %v737
    %v739 = vpop.f32.mrf.mxu0
    %740 = vdwg.mxu0
    %741 = vmatpush.bf16.msra.mxu0 %v660
    %742 = vmatpush.bf16.msra.mxu0 %v656
    %743 = vmatpush.bf16.msra.mxu0 %v652
    %744 = vmatpush.bf16.msra.mxu0 %v648
    %745 = vmatpush.bf16.msra.mxu0 %v644
    %746 = vmatpush.bf16.msra.mxu0 %v640
    %747 = vmatpush.bf16.msra.mxu0 %v636
    %748 = vmatpush.bf16.msra.mxu0 %v632
    %749 = vmatmul.bf16.gmra.mxu0 %v333
    %v750 = vpop.f32.mrf.mxu0
    %v751 = vadd.f32 %v738, %v750
    %v752 = vpop.f32.mrf.mxu0
    %753 = vdwg.mxu0
    %754 = vmatpush.bf16.msra.mxu0 %v629
    %755 = vmatpush.bf16.msra.mxu0 %v625
    %756 = vmatpush.bf16.msra.mxu0 %v621
    %757 = vmatpush.bf16.msra.mxu0 %v617
    %758 = vmatpush.bf16.msra.mxu0 %v613
    %759 = vmatpush.bf16.msra.mxu0 %v609
    %760 = vmatpush.bf16.msra.mxu0 %v605
    %761 = vmatpush.bf16.msra.mxu0 %v601
    %762 = vmatmul.bf16.gmra.mxu0 %v332
    %v763 = vpop.f32.mrf.mxu0
    %v764 = vadd.f32 %v401, %v763
    %v765 = vpop.f32.mrf.mxu0
    %766 = vdwg.mxu0
    %767 = vmatpush.bf16.msra.mxu0 %v661
    %768 = vmatpush.bf16.msra.mxu0 %v657
    %769 = vmatpush.bf16.msra.mxu0 %v653
    %770 = vmatpush.bf16.msra.mxu0 %v649
    %771 = vmatpush.bf16.msra.mxu0 %v645
    %772 = vmatpush.bf16.msra.mxu0 %v641
    %773 = vmatpush.bf16.msra.mxu0 %v637
    %774 = vmatpush.bf16.msra.mxu0 %v633
    %775 = vmatmul.bf16.gmra.mxu0 %v333
    %v776 = vpop.f32.mrf.mxu0
    %v777 = vadd.f32 %v764, %v776
    %v778 = vpop.f32.mrf.mxu0
    %779 = vdwg.mxu0
    %780 = vmatpush.bf16.msra.mxu0 %v630
    %781 = vmatpush.bf16.msra.mxu0 %v626
    %782 = vmatpush.bf16.msra.mxu0 %v622
    %783 = vmatpush.bf16.msra.mxu0 %v618
    %784 = vmatpush.bf16.msra.mxu0 %v614
    %785 = vmatpush.bf16.msra.mxu0 %v610
    %786 = vmatpush.bf16.msra.mxu0 %v606
    %787 = vmatpush.bf16.msra.mxu0 %v602
    %788 = vmatmul.bf16.gmra.mxu0 %v332
    %v789 = vpop.f32.mrf.mxu0
    %v790 = vadd.f32 %v402, %v789
    %v791 = vpop.f32.mrf.mxu0
    %792 = vdwg.mxu0
    %793 = vmatpush.bf16.msra.mxu0 %v662
    %794 = vmatpush.bf16.msra.mxu0 %v658
    %795 = vmatpush.bf16.msra.mxu0 %v654
    %796 = vmatpush.bf16.msra.mxu0 %v650
    %797 = vmatpush.bf16.msra.mxu0 %v646
    %798 = vmatpush.bf16.msra.mxu0 %v642
    %799 = vmatpush.bf16.msra.mxu0 %v638
    %800 = vmatpush.bf16.msra.mxu0 %v634
    %801 = vmatmul.bf16.gmra.mxu0 %v333
    %v802 = vpop.f32.mrf.mxu0
    %v803 = vadd.f32 %v790, %v802
    %v804 = vpop.f32.mrf.mxu0
    %805 = vdwg.mxu0
    %806 = vmatpush.bf16.msra.mxu0 %v631
    %807 = vmatpush.bf16.msra.mxu0 %v627
    %808 = vmatpush.bf16.msra.mxu0 %v623
    %809 = vmatpush.bf16.msra.mxu0 %v619
    %810 = vmatpush.bf16.msra.mxu0 %v615
    %811 = vmatpush.bf16.msra.mxu0 %v611
    %812 = vmatpush.bf16.msra.mxu0 %v607
    %813 = vmatpush.bf16.msra.mxu0 %v603
    %814 = vmatmul.bf16.gmra.mxu0 %v332
    %v815 = vpop.f32.mrf.mxu0
    %v816 = vadd.f32 %v403, %v815
    %v817 = vpop.f32.mrf.mxu0
    %818 = vdwg.mxu0
    %819 = vmatpush.bf16.msra.mxu0 %v663
    %820 = vmatpush.bf16.msra.mxu0 %v659
    %821 = vmatpush.bf16.msra.mxu0 %v655
    %822 = vmatpush.bf16.msra.mxu0 %v651
    %823 = vmatpush.bf16.msra.mxu0 %v647
    %824 = vmatpush.bf16.msra.mxu0 %v643
    %825 = vmatpush.bf16.msra.mxu0 %v639
    %826 = vmatpush.bf16.msra.mxu0 %v635
    %827 = vmatmul.bf16.gmra.mxu0 %v333
    %v828 = vpop.f32.mrf.mxu0
    %v829 = vadd.f32 %v816, %v828
    %v830 = vpop.f32.mrf.mxu0
    %831 = vdwg.mxu0
    %v832 = vmax.f32 %v751, 0.0
    %v833 = vmax.f32 %v777, 0.0
    %v834 = vmax.f32 %v803, 0.0
    %v835 = vmax.f32 %v829, 0.0
    %v836 = vpack.c.bf16 %v832, %v832
    %v837 = vpack.c.bf16 %v833, %v833
    %v838 = vpack.c.bf16 %v834, %v834
    %v839 = vpack.c.bf16 %v835, %v835
    %v840 = vld [vmem:[%s11] sm:$0xf]
    %v841 = vld [vmem:[%s11 + $0x4] sm:$0xf]
    %v842 = vld [vmem:[%s11 + $0x8] sm:$0xf]
    %v843 = vld [vmem:[%s11 + $0xc] sm:$0xf]
    %v844 = vld [vmem:[%s11 + $0x10] sm:$0xf]
    %v845 = vld [vmem:[%s11 + $0x14] sm:$0xf]
    %v846 = vld [vmem:[%s11 + $0x18] sm:$0xf]
    %v847 = vld [vmem:[%s11 + $0x1c] sm:$0xf]
    %v848 = vld [vmem:[%s11 + $0x20] sm:$0xf]
    %v849 = vld [vmem:[%s11 + $0x24] sm:$0xf]
    %v850 = vld [vmem:[%s11 + $0x28] sm:$0xf]
    %v851 = vld [vmem:[%s11 + $0x2c] sm:$0xf]
    %v852 = vld [vmem:[%s11 + $0x30] sm:$0xf]
    %v853 = vld [vmem:[%s11 + $0x34] sm:$0xf]
    %v854 = vld [vmem:[%s11 + $0x38] sm:$0xf]
    %v855 = vld [vmem:[%s11 + $0x3c] sm:$0xf]
    %v856 = vld [vmem:[%s11 + $0x40] sm:$0xf]
    %v857 = vld [vmem:[%s11 + $0x44] sm:$0xf]
    %v858 = vld [vmem:[%s11 + $0x48] sm:$0xf]
    %v859 = vld [vmem:[%s11 + $0x4c] sm:$0xf]
    %v860 = vld [vmem:[%s11 + $0x50] sm:$0xf]
    %v861 = vld [vmem:[%s11 + $0x54] sm:$0xf]
    %v862 = vld [vmem:[%s11 + $0x58] sm:$0xf]
    %v863 = vld [vmem:[%s11 + $0x5c] sm:$0xf]
    %v864 = vld [vmem:[%s11 + $0x60] sm:$0xf]
    %v865 = vld [vmem:[%s11 + $0x64] sm:$0xf]
    %v866 = vld [vmem:[%s11 + $0x68] sm:$0xf]
    %v867 = vld [vmem:[%s11 + $0x6c] sm:$0xf]
    %v868 = vld [vmem:[%s11 + $0x70] sm:$0xf]
    %v869 = vld [vmem:[%s11 + $0x74] sm:$0xf]
    %v870 = vld [vmem:[%s11 + $0x78] sm:$0xf]
    %v871 = vld [vmem:[%s11 + $0x7c] sm:$0xf]
    %v872 = vld [vmem:[%s11 + $0x80] sm:$0xf]
    %v873 = vld [vmem:[%s11 + $0x84] sm:$0xf]
    %v874 = vld [vmem:[%s11 + $0x88] sm:$0xf]
    %v875 = vld [vmem:[%s11 + $0x8c] sm:$0xf]
    %v876 = vld [vmem:[%s11 + $0x90] sm:$0xf]
    %v877 = vld [vmem:[%s11 + $0x94] sm:$0xf]
    %v878 = vld [vmem:[%s11 + $0x98] sm:$0xf]
    %v879 = vld [vmem:[%s11 + $0x9c] sm:$0xf]
    %v880 = vld [vmem:[%s11 + $0xa0] sm:$0xf]
    %v881 = vld [vmem:[%s11 + $0xa4] sm:$0xf]
    %v882 = vld [vmem:[%s11 + $0xa8] sm:$0xf]
    %v883 = vld [vmem:[%s11 + $0xac] sm:$0xf]
    %v884 = vld [vmem:[%s11 + $0xb0] sm:$0xf]
    %v885 = vld [vmem:[%s11 + $0xb4] sm:$0xf]
    %v886 = vld [vmem:[%s11 + $0xb8] sm:$0xf]
    %v887 = vld [vmem:[%s11 + $0xbc] sm:$0xf]
    %v888 = vld [vmem:[%s11 + $0xc0] sm:$0xf]
    %v889 = vld [vmem:[%s11 + $0xc4] sm:$0xf]
    %v890 = vld [vmem:[%s11 + $0xc8] sm:$0xf]
    %v891 = vld [vmem:[%s11 + $0xcc] sm:$0xf]
    %v892 = vld [vmem:[%s11 + $0xd0] sm:$0xf]
    %v893 = vld [vmem:[%s11 + $0xd4] sm:$0xf]
    %v894 = vld [vmem:[%s11 + $0xd8] sm:$0xf]
    %v895 = vld [vmem:[%s11 + $0xdc] sm:$0xf]
    %v896 = vld [vmem:[%s11 + $0xe0] sm:$0xf]
    %v897 = vld [vmem:[%s11 + $0xe4] sm:$0xf]
    %v898 = vld [vmem:[%s11 + $0xe8] sm:$0xf]
    %v899 = vld [vmem:[%s11 + $0xec] sm:$0xf]
    %v900 = vld [vmem:[%s11 + $0xf0] sm:$0xf]
    %v901 = vld [vmem:[%s11 + $0xf4] sm:$0xf]
    %v902 = vld [vmem:[%s11 + $0xf8] sm:$0xf]
    %v903 = vld [vmem:[%s11 + $0xfc] sm:$0xf]
    %v904 = vld [vmem:[%s12] sm:$0x1]
    %v906 = vperm.slane %v904, 0
    %v972 = vunpack.c.l.b16 %v840
    %v973 = vunpack.c.l.b16 %v841
    %v974 = vunpack.c.l.b16 %v842
    %v975 = vunpack.c.l.b16 %v843
    %v976 = vunpack.c.l.b16 %v844
    %v977 = vunpack.c.l.b16 %v845
    %v978 = vunpack.c.l.b16 %v846
    %v979 = vunpack.c.l.b16 %v847
    %v980 = vunpack.c.l.b16 %v848
    %v981 = vunpack.c.l.b16 %v849
    %v982 = vunpack.c.l.b16 %v850
    %v983 = vunpack.c.l.b16 %v851
    %v984 = vunpack.c.l.b16 %v852
    %v985 = vunpack.c.l.b16 %v853
    %v986 = vunpack.c.l.b16 %v854
    %v987 = vunpack.c.l.b16 %v855
    %v988 = vunpack.c.l.b16 %v856
    %v989 = vunpack.c.l.b16 %v857
    %v990 = vunpack.c.l.b16 %v858
    %v991 = vunpack.c.l.b16 %v859
    %v992 = vunpack.c.l.b16 %v860
    %v993 = vunpack.c.l.b16 %v861
    %v994 = vunpack.c.l.b16 %v862
    %v995 = vunpack.c.l.b16 %v863
    %v996 = vunpack.c.l.b16 %v864
    %v997 = vunpack.c.l.b16 %v865
    %v998 = vunpack.c.l.b16 %v866
    %v999 = vunpack.c.l.b16 %v867
    %v1000 = vunpack.c.l.b16 %v868
    %v1001 = vunpack.c.l.b16 %v869
    %v1002 = vunpack.c.l.b16 %v870
    %v1003 = vunpack.c.l.b16 %v871
    %v1004 = vunpack.c.l.b16 %v872
    %v1005 = vunpack.c.l.b16 %v873
    %v1006 = vunpack.c.l.b16 %v874
    %v1007 = vunpack.c.l.b16 %v875
    %v1008 = vunpack.c.l.b16 %v876
    %v1009 = vunpack.c.l.b16 %v877
    %v1010 = vunpack.c.l.b16 %v878
    %v1011 = vunpack.c.l.b16 %v879
    %v1012 = vunpack.c.l.b16 %v880
    %v1013 = vunpack.c.l.b16 %v881
    %v1014 = vunpack.c.l.b16 %v882
    %v1015 = vunpack.c.l.b16 %v883
    %v1016 = vunpack.c.l.b16 %v884
    %v1017 = vunpack.c.l.b16 %v885
    %v1018 = vunpack.c.l.b16 %v886
    %v1019 = vunpack.c.l.b16 %v887
    %v1020 = vunpack.c.l.b16 %v888
    %v1021 = vunpack.c.l.b16 %v889
    %v1022 = vunpack.c.l.b16 %v890
    %v1023 = vunpack.c.l.b16 %v891
    %v1024 = vunpack.c.l.b16 %v892
    %v1025 = vunpack.c.l.b16 %v893
    %v1026 = vunpack.c.l.b16 %v894
    %v1027 = vunpack.c.l.b16 %v895
    %v1028 = vunpack.c.l.b16 %v896
    %v1029 = vunpack.c.l.b16 %v897
    %v1030 = vunpack.c.l.b16 %v898
    %v1031 = vunpack.c.l.b16 %v899
    %v1032 = vunpack.c.l.b16 %v900
    %v1033 = vunpack.c.l.b16 %v901
    %v1034 = vunpack.c.l.b16 %v902
    %v1035 = vunpack.c.l.b16 %v903
    %v1036 = vpack.c.b16 %v973, %v972
    %v1037 = vpack.c.b16 %v975, %v974
    %v1038 = vpack.c.b16 %v977, %v976
    %v1039 = vpack.c.b16 %v979, %v978
    %v1040 = vpack.c.b16 %v981, %v980
    %v1041 = vpack.c.b16 %v983, %v982
    %v1042 = vpack.c.b16 %v985, %v984
    %v1043 = vpack.c.b16 %v987, %v986
    %v1044 = vpack.c.b16 %v989, %v988
    %v1045 = vpack.c.b16 %v991, %v990
    %v1046 = vpack.c.b16 %v993, %v992
    %v1047 = vpack.c.b16 %v995, %v994
    %v1048 = vpack.c.b16 %v997, %v996
    %v1049 = vpack.c.b16 %v999, %v998
    %v1050 = vpack.c.b16 %v1001, %v1000
    %v1051 = vpack.c.b16 %v1003, %v1002
    %v1052 = vpack.c.b16 %v1005, %v1004
    %v1053 = vpack.c.b16 %v1007, %v1006
    %v1054 = vpack.c.b16 %v1009, %v1008
    %v1055 = vpack.c.b16 %v1011, %v1010
    %v1056 = vpack.c.b16 %v1013, %v1012
    %v1057 = vpack.c.b16 %v1015, %v1014
    %v1058 = vpack.c.b16 %v1017, %v1016
    %v1059 = vpack.c.b16 %v1019, %v1018
    %v1060 = vpack.c.b16 %v1021, %v1020
    %v1061 = vpack.c.b16 %v1023, %v1022
    %v1062 = vpack.c.b16 %v1025, %v1024
    %v1063 = vpack.c.b16 %v1027, %v1026
    %v1064 = vpack.c.b16 %v1029, %v1028
    %v1065 = vpack.c.b16 %v1031, %v1030
    %v1066 = vpack.c.b16 %v1033, %v1032
    %v1067 = vpack.c.b16 %v1035, %v1034
    %1100 = vmatpush.bf16.msra.mxu0 %v1043
    %1101 = vmatpush.bf16.msra.mxu0 %v1042
    %1102 = vmatpush.bf16.msra.mxu0 %v1041
    %1103 = vmatpush.bf16.msra.mxu0 %v1040
    %1104 = vmatpush.bf16.msra.mxu0 %v1039
    %1105 = vmatpush.bf16.msra.mxu0 %v1038
    %1106 = vmatpush.bf16.msra.mxu0 %v1037
    %1107 = vmatpush.bf16.msra.mxu0 %v1036
    %1108 = vmatmul.bf16.gmra.mxu0 %v836
    %v1109 = vpop.f32.mrf.mxu0
    %v1110 = vadd.f32 %v906, %v1109
    %v1111 = vpop.f32.mrf.mxu0
    %1112 = vdwg.mxu0
    %1113 = vmatpush.bf16.msra.mxu0 %v1051
    %1114 = vmatpush.bf16.msra.mxu0 %v1050
    %1115 = vmatpush.bf16.msra.mxu0 %v1049
    %1116 = vmatpush.bf16.msra.mxu0 %v1048
    %1117 = vmatpush.bf16.msra.mxu0 %v1047
    %1118 = vmatpush.bf16.msra.mxu0 %v1046
    %1119 = vmatpush.bf16.msra.mxu0 %v1045
    %1120 = vmatpush.bf16.msra.mxu0 %v1044
    %1121 = vmatmul.bf16.gmra.mxu0 %v837
    %v1122 = vpop.f32.mrf.mxu0
    %v1123 = vadd.f32 %v1110, %v1122
    %v1124 = vpop.f32.mrf.mxu0
    %1125 = vdwg.mxu0
    %1126 = vmatpush.bf16.msra.mxu0 %v1059
    %1127 = vmatpush.bf16.msra.mxu0 %v1058
    %1128 = vmatpush.bf16.msra.mxu0 %v1057
    %1129 = vmatpush.bf16.msra.mxu0 %v1056
    %1130 = vmatpush.bf16.msra.mxu0 %v1055
    %1131 = vmatpush.bf16.msra.mxu0 %v1054
    %1132 = vmatpush.bf16.msra.mxu0 %v1053
    %1133 = vmatpush.bf16.msra.mxu0 %v1052
    %1134 = vmatmul.bf16.gmra.mxu0 %v838
    %v1135 = vpop.f32.mrf.mxu0
    %v1136 = vadd.f32 %v1123, %v1135
    %v1137 = vpop.f32.mrf.mxu0
    %1138 = vdwg.mxu0
    %1139 = vmatpush.bf16.msra.mxu0 %v1067
    %1140 = vmatpush.bf16.msra.mxu0 %v1066
    %1141 = vmatpush.bf16.msra.mxu0 %v1065
    %1142 = vmatpush.bf16.msra.mxu0 %v1064
    %1143 = vmatpush.bf16.msra.mxu0 %v1063
    %1144 = vmatpush.bf16.msra.mxu0 %v1062
    %1145 = vmatpush.bf16.msra.mxu0 %v1061
    %1146 = vmatpush.bf16.msra.mxu0 %v1060
    %1147 = vmatmul.bf16.gmra.mxu0 %v839
    %v1148 = vpop.f32.mrf.mxu0
    %v1149 = vadd.f32 %v1136, %v1148
    %v1150 = vpop.f32.mrf.mxu0
    %1151 = vdwg.mxu0
    %v1152 = vmax.f32 %v1149, 0.0
    %v1153 = vpack.c.bf16 %v1152, %v1152
    %v1154 = vunpack.c.l.bf16 %v1153
    %v1155 = vld [vmem:[%s13] sm:$0x1]
    %v1157 = vperm.slane %v1155, 0
    %v1159 = vmul.f32 %v1154, %v1157
    %v1160 = vsel %vm183, %v1159, 0.0
    %1161 = vadd.xlane.f32.xlu0 %v1160
    %v1162 = vpop.xlane.xlu0 %1161
    %v1163 = vld [vmem:[#allocation2] sm:$0x1]
    %v1165 = vperm.slane %v1163, 0
    %v1167 = vadd.f32 %v1162, %v1165
    %v1168 = vsub.f32 0.0, %v1167
    %v1169 = vmul.f32 %v1168, 1.442695
    %v1170 = vpow.pop %v1169
    %v1171 = vadd.f32 %v1170, 1.0
    %v1172 = vrcp.pop %v1171
    %vm1173 = vcmask 7168
    %1174 = vst.msk [vmem:[%s15] sm:$0xff] %vm1173, %v1172
    // Predicated region
    $region66: #{tpu_custom_call.1} parent=1 // pred_check
      _
    $region67: #{tpu_custom_call.1} parent=1 // pred_check_branch
      %1176 = sbr.rel (0) target = $region69
    $region68: #{tpu_custom_call.1} parent=1 // pred_region
      _
    $region69: #{tpu_custom_call.1} parent=1 // pred_fallthru
      _
    // Predicated region
    $region70: #{tpu_custom_call.1} parent=1 // pred_check
      _
    $region71: #{tpu_custom_call.1} parent=1 // pred_check_branch
      %1178 = sbr.rel (0) target = $region73
    $region72: #{tpu_custom_call.1} parent=1 // pred_region
      _
    $region73: #{tpu_custom_call.1} parent=1 // pred_fallthru
      _
    %1179 = vsyncpa [#allocation4], 1

</llo_original>
